<compile_context>
chip_gen: v5e
topology: v5e:2x2
jax: 0.10.0
libtpu: 0.0.40
codegen_flags: <defaults>
</compile_context>

<pallas_src>
import jax
import jax.numpy as jnp
from jax.experimental import pallas as pl
from jax.experimental.pallas import tpu as pltpu

_LANE = 128
_SUBLANE = 8
_MAX_TM = 2048          # rows per batch tile; ~10 MB peak VMEM at this size


def _round_up(x, m):
    return ((x + m - 1) // m) * m


def _mlp_kernel(x_ref, w1_ref, b1_ref, w2_ref, b2_ref,
                w3_ref, b3_ref, w4_ref, b4_ref, o_ref):
    # One (tm, s) batch tile per grid step. Cast-to-bf16 happens in-kernel so the HBM
    # input stays unpadded f32. Four MXU matmuls (bf16 operands, f32 accumulation),
    # bias + ReLU in f32 on the VPU.
    x = x_ref[...].astype(jnp.bfloat16)

    h = jnp.dot(x, w1_ref[...], preferred_element_type=jnp.float32)
    h = jnp.maximum(h + b1_ref[...], 0.0)

    h = jnp.dot(h.astype(jnp.bfloat16), w2_ref[...], preferred_element_type=jnp.float32)
    h = jnp.maximum(h + b2_ref[...], 0.0)

    h = jnp.dot(h.astype(jnp.bfloat16), w3_ref[...], preferred_element_type=jnp.float32)
    h = jnp.maximum(h + b3_ref[...], 0.0)

    h = jnp.dot(h.astype(jnp.bfloat16), w4_ref[...], preferred_element_type=jnp.float32)
    h = h + b4_ref[...]

    # Slice the lane-padded last layer back to the true output width and store directly
    # into the unpadded (tm, s) output block (no wrapper-side slice / 8x fewer bytes).
    s = o_ref.shape[-1]
    o_ref[...] = h[:, :s].astype(o_ref.dtype)


def _pick_tm(batch, tm):
    """Batch-tile selection.

    - tiny batch: single full-extent block (always legal, one pallas_call, no padding)
    - otherwise: >= 2 grid steps (keeps both v7x TensorCores busy), tile a multiple of 8
      sublanes, capped at _MAX_TM rows so intermediates stay well inside VMEM on all gens.
    """
    if tm is None:
        if batch <= 2 * _SUBLANE:
            return batch
        tm = min(_MAX_TM, _round_up(pl.cdiv(batch, 2), _SUBLANE))
    if tm >= batch:
        return batch                      # full-extent block on the batch dim
    return max(_SUBLANE, _round_up(tm, _SUBLANE))


def net_forward(x, params, s, tm=None):
    """x: (B, s) float32. params: bf16 weights (w1:(s,128), w2:(128,384), w3:(384,128),
    w4:(128,128)) and f32 biases (1, out_pad). Returns (B, s) float32."""
    B = x.shape[0]
    w1, b1 = params["w1"], params["b1"]
    w2, b2 = params["w2"], params["b2"]
    w3, b3 = params["w3"], params["b3"]
    w4, b4 = params["w4"], params["b4"]

    tm = _pick_tm(B, tm)
    grid = (pl.cdiv(B, tm),)              # partial final block is masked, no batch pad

    def resident(a):
        # Full-array block, constant index map: DMA'd once, stays VMEM-resident.
        return pl.BlockSpec(a.shape, lambda i: (0, 0))

    out = pl.pallas_call(
        _mlp_kernel,
        out_shape=jax.ShapeDtypeStruct((B, s), jnp.float32),
        grid=grid,
        in_specs=[pl.BlockSpec((tm, s), lambda i: (i, 0))]
                 + [resident(a) for a in (w1, b1, w2, b2, w3, b3, w4, b4)],
        out_specs=pl.BlockSpec((tm, s), lambda i: (i, 0)),
        compiler_params=pltpu.CompilerParams(
            dimension_semantics=("parallel",),
            vmem_limit_bytes=48 * 1024 * 1024,   # headroom for tm=2048, < v7x 64 MiB
        ),
    )(x, w1, b1, w2, b2, w3, b3, w4, b4)
    return out


def init_params(key, s):
    """nn.Linear-style uniform(-1/sqrt(fan_in), 1/sqrt(fan_in)) init.

    kernel params: weights bf16 with out-dims padded to lane multiples; layer-1 keeps its
    true K (= s) so the unpadded input feeds it directly. biases f32, (1, out_pad).
    ref params: exact unpadded f32 values for the golden reference.
    """
    dims = [(s, 120), (120, 300), (300, 120), (120, s)]
    kernel_params, ref_params = {}, {}
    keys = jax.random.split(key, 2 * len(dims))
    for i, (fan_in, fan_out) in enumerate(dims):
        bound = 1.0 / jnp.sqrt(jnp.float32(fan_in))
        w = jax.random.uniform(keys[2 * i], (fan_in, fan_out), jnp.float32,
                               minval=-bound, maxval=bound)
        b = jax.random.uniform(keys[2 * i + 1], (fan_out,), jnp.float32,
                               minval=-bound, maxval=bound)
        in_p = fan_in if i == 0 else _round_up(fan_in, _LANE)   # no K pad on layer 1
        out_p = _round_up(fan_out, _LANE)
        w_p = jnp.zeros((in_p, out_p), jnp.float32).at[:fan_in, :fan_out].set(w)
        b_p = jnp.zeros((1, out_p), jnp.float32).at[0, :fan_out].set(b)
        kernel_params[f"w{i + 1}"] = w_p.astype(jnp.bfloat16)
        kernel_params[f"b{i + 1}"] = b_p
        ref_params[f"w{i + 1}"] = w
        ref_params[f"b{i + 1}"] = b
    return kernel_params, ref_params


def reference_forward_bf16(x, kernel_params, s):
    """Same padded/bf16 computation as the kernel, in plain jnp (tight check)."""
    h = x.astype(jnp.bfloat16)
    for i in range(1, 5):
        w, b = kernel_params[f"w{i}"], kernel_params[f"b{i}"]
        h = jnp.dot(h, w, preferred_element_type=jnp.float32) + b
        if i < 4:
            h = jnp.maximum(h, 0.0).astype(jnp.bfloat16)
    return h[:, :s]


def reference_forward_f32(x, ref_params):
    """Exact f32, unpadded PyTorch-equivalent forward (loose golden check)."""
    h = x
    for i in range(1, 5):
        h = h @ ref_params[f"w{i}"] + ref_params[f"b{i}"]
        if i < 4:
            h = jnp.maximum(h, 0.0)
    return h


if __name__ == "__main__":
    key = jax.random.PRNGKey(0)
    k_params, k_x = jax.random.split(key)
    k_x1, k_x2, k_x3 = jax.random.split(k_x, 3)

    s = 16
    kernel_params, ref_params = init_params(k_params, s)

    # Latency path: tiny batch, single full-extent block, one pallas_call, no wrapper
    # pad / cast / slice ops.
    B = 2
    x = jax.random.normal(k_x1, (B, s), jnp.float32)
    out = jax.block_until_ready(net_forward(x, kernel_params, s))
    assert out.shape == (B, s)
    assert jnp.allclose(out, reference_forward_bf16(x, kernel_params, s),
                        atol=1e-2, rtol=1e-2)
    assert jnp.allclose(out, reference_forward_f32(x, ref_params),
                        atol=5e-2, rtol=5e-2)

    # Throughput path: auto-picked tile -> 2 grid steps of 40 rows (both v7x TCs busy).
    B2 = 80
    x2 = jax.random.normal(k_x2, (B2, s), jnp.float32)
    out2 = jax.block_until_ready(net_forward(x2, kernel_params, s))
    assert out2.shape == (B2, s)
    assert jnp.allclose(out2, reference_forward_bf16(x2, kernel_params, s),
                        atol=1e-2, rtol=1e-2)
    assert jnp.allclose(out2, reference_forward_f32(x2, ref_params),
                        atol=5e-2, rtol=5e-2)

    # Partial final block (B not a multiple of tm): out-of-range rows are masked on store,
    # so no near-2x batch padding is ever needed.
    B3 = 50
    x3 = jax.random.normal(k_x3, (B3, s), jnp.float32)
    out3 = jax.block_until_ready(net_forward(x3, kernel_params, s, tm=16))
    assert out3.shape == (B3, s)
    assert jnp.allclose(out3, reference_forward_bf16(x3, kernel_params, s),
                        atol=1e-2, rtol=1e-2)
    assert jnp.allclose(out3, reference_forward_f32(x3, ref_params),
                        atol=5e-2, rtol=5e-2)

    print("KERNEL_OK")
</pallas_src>

<mosaic_0001>
module attributes {stable_mosaic.version = 11 : i64} {
  func.func @_mlp_kernel(%arg0: i32, %arg1: memref<2x16xf32, #tpu.memory_space<vmem>>, %arg2: memref<16x128xbf16, #tpu.memory_space<vmem>>, %arg3: memref<1x128xf32, #tpu.memory_space<vmem>>, %arg4: memref<128x384xbf16, #tpu.memory_space<vmem>>, %arg5: memref<1x384xf32, #tpu.memory_space<vmem>>, %arg6: memref<384x128xbf16, #tpu.memory_space<vmem>>, %arg7: memref<1x128xf32, #tpu.memory_space<vmem>>, %arg8: memref<128x128xbf16, #tpu.memory_space<vmem>>, %arg9: memref<1x128xf32, #tpu.memory_space<vmem>>, %arg10: memref<2x16xf32, #tpu.memory_space<vmem>>) attributes {dimension_semantics = [#tpu.dimension_semantics<parallel>], iteration_bounds = array<i64: 1>, scalar_prefetch = 0 : i64, scratch_operands = 0 : i64, tpu.core_type = #tpu.core_type<tc>, window_params = [{transform_indices = @transform_0, window_bounds = array<i64: 2, 16>}, {pipeline_mode = #tpu.pipeline_mode<synchronous>, transform_indices = @transform_1, window_bounds = array<i64: 16, 128>}, {pipeline_mode = #tpu.pipeline_mode<synchronous>, transform_indices = @transform_2, window_bounds = array<i64: 1, 128>}, {pipeline_mode = #tpu.pipeline_mode<synchronous>, transform_indices = @transform_3, window_bounds = array<i64: 128, 384>}, {pipeline_mode = #tpu.pipeline_mode<synchronous>, transform_indices = @transform_4, window_bounds = array<i64: 1, 384>}, {pipeline_mode = #tpu.pipeline_mode<synchronous>, transform_indices = @transform_5, window_bounds = array<i64: 384, 128>}, {pipeline_mode = #tpu.pipeline_mode<synchronous>, transform_indices = @transform_6, window_bounds = array<i64: 1, 128>}, {pipeline_mode = #tpu.pipeline_mode<synchronous>, transform_indices = @transform_7, window_bounds = array<i64: 128, 128>}, {pipeline_mode = #tpu.pipeline_mode<synchronous>, transform_indices = @transform_8, window_bounds = array<i64: 1, 128>}, {transform_indices = @transform_9, window_bounds = array<i64: 2, 16>}]} {
    %c0 = arith.constant 0 : index
    %c0_0 = arith.constant 0 : index
    %0 = vector.load %arg1[%c0, %c0_0] : memref<2x16xf32, #tpu.memory_space<vmem>>, vector<2x16xf32>
    %1 = arith.truncf %0 : vector<2x16xf32> to vector<2x16xbf16>
    %c0_1 = arith.constant 0 : index
    %c0_2 = arith.constant 0 : index
    %2 = vector.load %arg2[%c0_1, %c0_2] : memref<16x128xbf16, #tpu.memory_space<vmem>>, vector<16x128xbf16>
    %cst = arith.constant dense<0.000000e+00> : vector<2x128xf32>
    %3 = tpu.matmul %1, %2, %cst {dimension_numbers = #tpu.dot_dimension_numbers<[1], [0], [0], [1], [0, 0, 1, 1], [], []>} : vector<2x16xbf16>, vector<16x128xbf16>, vector<2x128xf32> -> vector<2x128xf32>
    %c0_3 = arith.constant 0 : index
    %c0_4 = arith.constant 0 : index
    %4 = vector.load %arg3[%c0_3, %c0_4] : memref<1x128xf32, #tpu.memory_space<vmem>>, vector<1x128xf32>
    %5 = vector.broadcast %4 : vector<1x128xf32> to vector<2x128xf32>
    %6 = arith.addf %3, %5 : vector<2x128xf32>
    %cst_5 = arith.constant 0.000000e+00 : f32
    %7 = vector.broadcast %cst_5 : f32 to vector<2x128xf32>
    %8 = arith.maximumf %6, %7 : vector<2x128xf32>
    %9 = arith.truncf %8 : vector<2x128xf32> to vector<2x128xbf16>
    %c0_6 = arith.constant 0 : index
    %c0_7 = arith.constant 0 : index
    %10 = vector.load %arg4[%c0_6, %c0_7] : memref<128x384xbf16, #tpu.memory_space<vmem>>, vector<128x384xbf16>
    %cst_8 = arith.constant dense<0.000000e+00> : vector<2x384xf32>
    %11 = tpu.matmul %9, %10, %cst_8 {dimension_numbers = #tpu.dot_dimension_numbers<[1], [0], [0], [1], [0, 0, 1, 1], [], []>} : vector<2x128xbf16>, vector<128x384xbf16>, vector<2x384xf32> -> vector<2x384xf32>
    %c0_9 = arith.constant 0 : index
    %c0_10 = arith.constant 0 : index
    %12 = vector.load %arg5[%c0_9, %c0_10] : memref<1x384xf32, #tpu.memory_space<vmem>>, vector<1x384xf32>
    %13 = vector.broadcast %12 : vector<1x384xf32> to vector<2x384xf32>
    %14 = arith.addf %11, %13 : vector<2x384xf32>
    %cst_11 = arith.constant 0.000000e+00 : f32
    %15 = vector.broadcast %cst_11 : f32 to vector<2x384xf32>
    %16 = arith.maximumf %14, %15 : vector<2x384xf32>
    %17 = arith.truncf %16 : vector<2x384xf32> to vector<2x384xbf16>
    %c0_12 = arith.constant 0 : index
    %c0_13 = arith.constant 0 : index
    %18 = vector.load %arg6[%c0_12, %c0_13] : memref<384x128xbf16, #tpu.memory_space<vmem>>, vector<384x128xbf16>
    %cst_14 = arith.constant dense<0.000000e+00> : vector<2x128xf32>
    %19 = tpu.matmul %17, %18, %cst_14 {dimension_numbers = #tpu.dot_dimension_numbers<[1], [0], [0], [1], [0, 0, 1, 1], [], []>} : vector<2x384xbf16>, vector<384x128xbf16>, vector<2x128xf32> -> vector<2x128xf32>
    %c0_15 = arith.constant 0 : index
    %c0_16 = arith.constant 0 : index
    %20 = vector.load %arg7[%c0_15, %c0_16] : memref<1x128xf32, #tpu.memory_space<vmem>>, vector<1x128xf32>
    %21 = vector.broadcast %20 : vector<1x128xf32> to vector<2x128xf32>
    %22 = arith.addf %19, %21 : vector<2x128xf32>
    %cst_17 = arith.constant 0.000000e+00 : f32
    %23 = vector.broadcast %cst_17 : f32 to vector<2x128xf32>
    %24 = arith.maximumf %22, %23 : vector<2x128xf32>
    %25 = arith.truncf %24 : vector<2x128xf32> to vector<2x128xbf16>
    %c0_18 = arith.constant 0 : index
    %c0_19 = arith.constant 0 : index
    %26 = vector.load %arg8[%c0_18, %c0_19] : memref<128x128xbf16, #tpu.memory_space<vmem>>, vector<128x128xbf16>
    %cst_20 = arith.constant dense<0.000000e+00> : vector<2x128xf32>
    %27 = tpu.matmul %25, %26, %cst_20 {dimension_numbers = #tpu.dot_dimension_numbers<[1], [0], [0], [1], [0, 0, 1, 1], [], []>} : vector<2x128xbf16>, vector<128x128xbf16>, vector<2x128xf32> -> vector<2x128xf32>
    %c0_21 = arith.constant 0 : index
    %c0_22 = arith.constant 0 : index
    %28 = vector.load %arg9[%c0_21, %c0_22] : memref<1x128xf32, #tpu.memory_space<vmem>>, vector<1x128xf32>
    %29 = vector.broadcast %28 : vector<1x128xf32> to vector<2x128xf32>
    %30 = arith.addf %27, %29 : vector<2x128xf32>
    %31 = vector.extract_strided_slice %30 {offsets = [0, 0], sizes = [2, 16], strides = [1, 1]} : vector<2x128xf32> to vector<2x16xf32>
    %c0_23 = arith.constant 0 : index
    %c0_24 = arith.constant 0 : index
    %32 = vector.load %arg10[%c0_23, %c0_24] : memref<2x16xf32, #tpu.memory_space<vmem>>, vector<2x16xf32>
    tpu.vector_store %arg10[%c0_23, %c0_24], %31 {strides = array<i32>} : memref<2x16xf32, #tpu.memory_space<vmem>>, vector<2x16xf32>,
    return
  }
  func.func @transform_0(%arg0: i32) -> (i32, i32) {
    %c0_i32 = arith.constant 0 : i32
    %c0_i32_0 = arith.constant 0 : i32
    return %arg0, %c0_i32 : i32, i32
  }
  func.func @transform_1(%arg0: i32) -> (i32, i32) {
    %c0_i32 = arith.constant 0 : i32
    %c0_i32_0 = arith.constant 0 : i32
    %c0_i32_1 = arith.constant 0 : i32
    return %c0_i32, %c0_i32_0 : i32, i32
  }
  func.func @transform_2(%arg0: i32) -> (i32, i32) {
    %c0_i32 = arith.constant 0 : i32
    %c0_i32_0 = arith.constant 0 : i32
    %c0_i32_1 = arith.constant 0 : i32
    return %c0_i32, %c0_i32_0 : i32, i32
  }
  func.func @transform_3(%arg0: i32) -> (i32, i32) {
    %c0_i32 = arith.constant 0 : i32
    %c0_i32_0 = arith.constant 0 : i32
    %c0_i32_1 = arith.constant 0 : i32
    return %c0_i32, %c0_i32_0 : i32, i32
  }
  func.func @transform_4(%arg0: i32) -> (i32, i32) {
    %c0_i32 = arith.constant 0 : i32
    %c0_i32_0 = arith.constant 0 : i32
    %c0_i32_1 = arith.constant 0 : i32
    return %c0_i32, %c0_i32_0 : i32, i32
  }
  func.func @transform_5(%arg0: i32) -> (i32, i32) {
    %c0_i32 = arith.constant 0 : i32
    %c0_i32_0 = arith.constant 0 : i32
    %c0_i32_1 = arith.constant 0 : i32
    return %c0_i32, %c0_i32_0 : i32, i32
  }
  func.func @transform_6(%arg0: i32) -> (i32, i32) {
    %c0_i32 = arith.constant 0 : i32
    %c0_i32_0 = arith.constant 0 : i32
    %c0_i32_1 = arith.constant 0 : i32
    return %c0_i32, %c0_i32_0 : i32, i32
  }
  func.func @transform_7(%arg0: i32) -> (i32, i32) {
    %c0_i32 = arith.constant 0 : i32
    %c0_i32_0 = arith.constant 0 : i32
    %c0_i32_1 = arith.constant 0 : i32
    return %c0_i32, %c0_i32_0 : i32, i32
  }
  func.func @transform_8(%arg0: i32) -> (i32, i32) {
    %c0_i32 = arith.constant 0 : i32
    %c0_i32_0 = arith.constant 0 : i32
    %c0_i32_1 = arith.constant 0 : i32
    return %c0_i32, %c0_i32_0 : i32, i32
  }
  func.func @transform_9(%arg0: i32) -> (i32, i32) {
    %c0_i32 = arith.constant 0 : i32
    %c0_i32_0 = arith.constant 0 : i32
    return %arg0, %c0_i32 : i32, i32
  }
}

</mosaic_0001>

<llo_original>
// kernel: tpu_custom_call.1
$region0: #{tpu_custom_call.1}
  #allocation0 [shape = 'u32[]', space=smem, size = 0x4, offset = 0x4, fixed_abs, tag = 'smem constant byte address 0x4 - core index']
  #allocation1 [shape = 'u32[72,128]{1,0:T(1,128)}', space=vmem, size = 0x9000, scoped, tag = 'internal scratch']
  %s0 = inlined_call_operand.hbm [shape: f32[2,16], index: 0, kind: input, shape index: {}]
  %s1 = inlined_call_operand.hbm [shape: bf16[16,128], index: 1, kind: input, shape index: {}]
  %s2 = inlined_call_operand.hbm [shape: f32[1,128], index: 2, kind: input, shape index: {}]
  %s3 = inlined_call_operand.hbm [shape: bf16[128,384], index: 3, kind: input, shape index: {}]
  %s4 = inlined_call_operand.vmem [shape: f32[1,384], index: 4, kind: input, shape index: {}]
  %s5 = inlined_call_operand.hbm [shape: bf16[384,128], index: 5, kind: input, shape index: {}]
  %s6 = inlined_call_operand.vmem [shape: f32[1,128], index: 6, kind: input, shape index: {}]
  %s7 = inlined_call_operand.hbm [shape: bf16[128,128], index: 7, kind: input, shape index: {}]
  %s8 = inlined_call_operand.vmem [shape: f32[1,128], index: 8, kind: input, shape index: {}]
  %s9 = inlined_call_operand.hbm [shape: f32[2,16], index: 9, kind: output, shape index: {}]
  %s10 = sld [smem:[#allocation0]]
  $region70: #{tpu_custom_call.1} parent=0
    _
  %s12 = ssub.s32 1, %s10
  %s13 = scalar_select 0, %s12, %s10
  $region1: #{tpu_custom_call.1} parent=0
    #allocation2 [shape = 'u8[1024]{0}', space=vmem, size = 0x400, scoped, tag = 'input window, operand 0, single buffered']
    #allocation3 [shape = 's32[1]{0}', space=sflag, size = 0x4, scoped, tag = 'scoped memory for tpu_custom_call.1']
    #allocation4 [shape = 's32[1]{0}', space=sflag, size = 0x4, scoped, tag = 'scoped memory for tpu_custom_call.1']
    #allocation5 [shape = 'u8[4096]{0}', space=vmem, size = 0x1000, scoped, tag = 'input window, operand 1, single buffered']
    #allocation6 [shape = 's32[1]{0}', space=sflag, size = 0x4, scoped, tag = 'scoped memory for tpu_custom_call.1']
    #allocation7 [shape = 'u8[512]{0}', space=vmem, size = 0x400, scoped, tag = 'input window, operand 2, single buffered']
    #allocation8 [shape = 'u8[98304]{0}', space=vmem, size = 0x18000, scoped, tag = 'input window, operand 3, single buffered']
    #allocation9 [shape = 's32[1]{0}', space=sflag, size = 0x4, scoped, tag = 'scoped memory for tpu_custom_call.1']
    #allocation10 [shape = 'u8[98304]{0}', space=vmem, size = 0x18000, scoped, tag = 'input window, operand 5, single buffered']
    #allocation11 [shape = 'u8[32768]{0}', space=vmem, size = 0x8000, scoped, tag = 'input window, operand 7, single buffered']
    #allocation12 [shape = 's32[1]{0}', space=sflag, size = 0x4, scoped, tag = 'scoped memory for tpu_custom_call.1']
    #allocation13 [shape = 'u8[1024]{0}', space=vmem, size = 0x400, scoped, tag = 'output window, operand 0, single buffered']
    %14 = vsyncpa [#allocation3], 0
    %15 = vsyncpa [#allocation6], 0
    %16 = vsyncpa [#allocation9], 0
    %17 = vsyncpa [#allocation12], 0
    %18 = vsyncpa [#allocation4], 0
    // Predicated region
    $region2: #{tpu_custom_call.1} parent=1 // pred_check
      _
    $region3: #{tpu_custom_call.1} parent=1 // pred_check_branch
      %20 = sbr.rel (0) target = $region5
    $region4: #{tpu_custom_call.1} parent=1 // pred_region
      %22 = vsyncadd [#allocation3], 0
      %s24 = sshll.u32 %s0, 4
      %s25 = int_to_ptr.hbm [resolvable:$true] %s24
      %s26 = sshll.u32 [#allocation2], 4
      %s27 = int_to_ptr.vmem [resolvable:$true] %s26
      %29 = dma.hbm_to_vmem [thread:$0]  %s25, 32, %s27, [#allocation3]
    $region5: #{tpu_custom_call.1} parent=1 // pred_fallthru
      _
    // Predicated region
    $region6: #{tpu_custom_call.1} parent=1 // pred_check
      _
    $region7: #{tpu_custom_call.1} parent=1 // pred_check_branch
      %31 = sbr.rel (0) target = $region9
    $region8: #{tpu_custom_call.1} parent=1 // pred_region
      %33 = vsyncadd [#allocation6], 0
      %s34 = sshll.u32 %s1, 4
      %s35 = int_to_ptr.hbm [resolvable:$true] %s34
      %s36 = sshll.u32 [#allocation5], 4
      %s37 = int_to_ptr.vmem [resolvable:$true] %s36
      %42 = dma.hbm_to_vmem [thread:$0]  %s35, 128, %s37, [#allocation6], 64, 64, 4
    $region9: #{tpu_custom_call.1} parent=1 // pred_fallthru
      _
    // Predicated region
    $region10: #{tpu_custom_call.1} parent=1 // pred_check
      _
    $region11: #{tpu_custom_call.1} parent=1 // pred_check_branch
      %44 = sbr.rel (0) target = $region13
    $region12: #{tpu_custom_call.1} parent=1 // pred_region
      %46 = vsyncadd [#allocation6], 0
      %s48 = sshll.u32 %s2, 4
      %s49 = int_to_ptr.hbm [resolvable:$true] %s48
      %s50 = sshll.u32 [#allocation7], 4
      %s51 = int_to_ptr.vmem [resolvable:$true] %s50
      %53 = dma.hbm_to_vmem [thread:$0]  %s49, 16, %s51, [#allocation6]
    $region13: #{tpu_custom_call.1} parent=1 // pred_fallthru
      _
    // Predicated region
    $region14: #{tpu_custom_call.1} parent=1 // pred_check
      _
    $region15: #{tpu_custom_call.1} parent=1 // pred_check_branch
      %55 = sbr.rel (0) target = $region17
    $region16: #{tpu_custom_call.1} parent=1 // pred_region
      %57 = vsyncadd [#allocation9], 0
      %s58 = sshll.u32 %s3, 4
      %s59 = int_to_ptr.hbm [resolvable:$true] %s58
      %s60 = sshll.u32 [#allocation8], 4
      %s61 = int_to_ptr.vmem [resolvable:$true] %s60
      %66 = dma.hbm_to_vmem [thread:$0]  %s59, 3072, %s61, [#allocation9], 192, 192, 12
    $region17: #{tpu_custom_call.1} parent=1 // pred_fallthru
      _
    // Predicated region
    $region18: #{tpu_custom_call.1} parent=1 // pred_check
      _
    $region19: #{tpu_custom_call.1} parent=1 // pred_check_branch
      %68 = sbr.rel (0) target = $region21
    $region20: #{tpu_custom_call.1} parent=1 // pred_region
      _
    $region21: #{tpu_custom_call.1} parent=1 // pred_fallthru
      _
    // Predicated region
    $region22: #{tpu_custom_call.1} parent=1 // pred_check
      _
    $region23: #{tpu_custom_call.1} parent=1 // pred_check_branch
      %70 = sbr.rel (0) target = $region25
    $region24: #{tpu_custom_call.1} parent=1 // pred_region
      %72 = vsyncadd [#allocation9], 0
      %s73 = sshll.u32 %s5, 4
      %s74 = int_to_ptr.hbm [resolvable:$true] %s73
      %s75 = sshll.u32 [#allocation10], 4
      %s76 = int_to_ptr.vmem [resolvable:$true] %s75
      %81 = dma.hbm_to_vmem [thread:$0]  %s74, 3072, %s76, [#allocation9], 64, 64, 4
    $region25: #{tpu_custom_call.1} parent=1 // pred_fallthru
      _
    // Predicated region
    $region26: #{tpu_custom_call.1} parent=1 // pred_check
      _
    $region27: #{tpu_custom_call.1} parent=1 // pred_check_branch
      %83 = sbr.rel (0) target = $region29
    $region28: #{tpu_custom_call.1} parent=1 // pred_region
      _
    $region29: #{tpu_custom_call.1} parent=1 // pred_fallthru
      _
    // Predicated region
    $region30: #{tpu_custom_call.1} parent=1 // pred_check
      _
    $region31: #{tpu_custom_call.1} parent=1 // pred_check_branch
      %85 = sbr.rel (0) target = $region33
    $region32: #{tpu_custom_call.1} parent=1 // pred_region
      %87 = vsyncadd [#allocation12], 0
      %s88 = sshll.u32 %s7, 4
      %s89 = int_to_ptr.hbm [resolvable:$true] %s88
      %s90 = sshll.u32 [#allocation11], 4
      %s91 = int_to_ptr.vmem [resolvable:$true] %s90
      %96 = dma.hbm_to_vmem [thread:$0]  %s89, 1024, %s91, [#allocation12], 64, 64, 4
    $region33: #{tpu_custom_call.1} parent=1 // pred_fallthru
      _
    // Predicated region
    $region34: #{tpu_custom_call.1} parent=1 // pred_check
      _
    $region35: #{tpu_custom_call.1} parent=1 // pred_check_branch
      %98 = sbr.rel (0) target = $region37
    $region36: #{tpu_custom_call.1} parent=1 // pred_region
      _
    $region37: #{tpu_custom_call.1} parent=1 // pred_fallthru
      _
    // Predicated region
    $region38: #{tpu_custom_call.1} parent=1 // pred_check
      _
    $region39: #{tpu_custom_call.1} parent=1 // pred_check_branch
      %100 = sbr.rel (0) target = $region41
    $region40: #{tpu_custom_call.1} parent=1 // pred_region
      %102 = dma.done [#allocation3], 32
    $region41: #{tpu_custom_call.1} parent=1 // pred_fallthru
      _
    // Predicated region
    $region42: #{tpu_custom_call.1} parent=1 // pred_check
      _
    $region43: #{tpu_custom_call.1} parent=1 // pred_check_branch
      %104 = sbr.rel (0) target = $region45
    $region44: #{tpu_custom_call.1} parent=1 // pred_region
      %106 = dma.done [#allocation6], 128
    $region45: #{tpu_custom_call.1} parent=1 // pred_fallthru
      _
    // Predicated region
    $region46: #{tpu_custom_call.1} parent=1 // pred_check
      _
    $region47: #{tpu_custom_call.1} parent=1 // pred_check_branch
      %108 = sbr.rel (0) target = $region49
    $region48: #{tpu_custom_call.1} parent=1 // pred_region
      %110 = dma.done [#allocation6], 16
    $region49: #{tpu_custom_call.1} parent=1 // pred_fallthru
      _
    // Predicated region
    $region50: #{tpu_custom_call.1} parent=1 // pred_check
      _
    $region51: #{tpu_custom_call.1} parent=1 // pred_check_branch
      %112 = sbr.rel (0) target = $region53
    $region52: #{tpu_custom_call.1} parent=1 // pred_region
      %114 = dma.done [#allocation9], 3072
    $region53: #{tpu_custom_call.1} parent=1 // pred_fallthru
      _
    // Predicated region
    $region54: #{tpu_custom_call.1} parent=1 // pred_check
      _
    $region55: #{tpu_custom_call.1} parent=1 // pred_check_branch
      %116 = sbr.rel (0) target = $region57
    $region56: #{tpu_custom_call.1} parent=1 // pred_region
      %118 = dma.done [#allocation9], 3072
    $region57: #{tpu_custom_call.1} parent=1 // pred_fallthru
      _
    // Predicated region
    $region58: #{tpu_custom_call.1} parent=1 // pred_check
      _
    $region59: #{tpu_custom_call.1} parent=1 // pred_check_branch
      %120 = sbr.rel (0) target = $region61
    $region60: #{tpu_custom_call.1} parent=1 // pred_region
      %122 = dma.done [#allocation12], 1024
    $region61: #{tpu_custom_call.1} parent=1 // pred_fallthru
      _
    %v124 = vld [vmem:[#allocation2] sm:$0x3]
    %v125 = vpack.c.bf16 %v124, %v124
    %v126 = vld [vmem:[#allocation5] sm:$0xf]
    %v127 = vld [vmem:[#allocation5 + $0x4] sm:$0xf]
    %v128 = vld [vmem:[#allocation7] sm:$0x1]
    %v130 = vperm.slane %v128, 0
    %v134 = vunpack.c.l.b16 %v126
    %v135 = vunpack.c.l.b16 %v127
    %v136 = vpack.c.b16 %v135, %v134
    %vm138 = vcmask 130048
    %v140 = vsel %vm138, %v125, 0
    %142 = vmatpush.bf16.msra.mxu0 0
    %143 = vmatpush.bf16.msra.mxu0 0
    %144 = vmatpush.bf16.msra.mxu0 0
    %145 = vmatpush.bf16.msra.mxu0 0
    %146 = vmatpush.bf16.msra.mxu0 0
    %147 = vmatpush.bf16.msra.mxu0 0
    %148 = vmatpush.bf16.msra.mxu0 0
    %149 = vmatpush.bf16.msra.mxu0 %v136
    %150 = vmatmul.bf16.gmra.mxu0 %v140
    %v151 = vpop.f32.mrf.mxu0
    %v152 = vadd.f32 %v130, %v151
    %v153 = vpop.f32.mrf.mxu0
    %154 = vdwg.mxu0
    %v155 = vmax.f32 %v152, 0.0
    %v156 = vpack.c.bf16 %v155, %v155
    %v157 = vld [vmem:[#allocation8] sm:$0xff]
    %v158 = vld [vmem:[#allocation8 + $0x8] sm:$0xf]
    %v159 = vld [vmem:[#allocation8 + $0xc] sm:$0xff]
    %v160 = vld [vmem:[#allocation8 + $0x14] sm:$0xf]
    %v161 = vld [vmem:[#allocation8 + $0x18] sm:$0xff]
    %v162 = vld [vmem:[#allocation8 + $0x20] sm:$0xf]
    %v163 = vld [vmem:[#allocation8 + $0x24] sm:$0xff]
    %v164 = vld [vmem:[#allocation8 + $0x2c] sm:$0xf]
    %v165 = vld [vmem:[#allocation8 + $0x30] sm:$0xff]
    %v166 = vld [vmem:[#allocation8 + $0x38] sm:$0xf]
    %v167 = vld [vmem:[#allocation8 + $0x3c] sm:$0xff]
    %v168 = vld [vmem:[#allocation8 + $0x44] sm:$0xf]
    %v169 = vld [vmem:[#allocation8 + $0x48] sm:$0xff]
    %v170 = vld [vmem:[#allocation8 + $0x50] sm:$0xf]
    %v171 = vld [vmem:[#allocation8 + $0x54] sm:$0xff]
    %v172 = vld [vmem:[#allocation8 + $0x5c] sm:$0xf]
    %v173 = vld [vmem:[#allocation8 + $0x60] sm:$0xff]
    %v174 = vld [vmem:[#allocation8 + $0x68] sm:$0xf]
    %v175 = vld [vmem:[#allocation8 + $0x6c] sm:$0xff]
    %v176 = vld [vmem:[#allocation8 + $0x74] sm:$0xf]
    %v177 = vld [vmem:[#allocation8 + $0x78] sm:$0xff]
    %v178 = vld [vmem:[#allocation8 + $0x80] sm:$0xf]
    %v179 = vld [vmem:[#allocation8 + $0x84] sm:$0xff]
    %v180 = vld [vmem:[#allocation8 + $0x8c] sm:$0xf]
    %v181 = vld [vmem:[#allocation8 + $0x90] sm:$0xff]
    %v182 = vld [vmem:[#allocation8 + $0x98] sm:$0xf]
    %v183 = vld [vmem:[#allocation8 + $0x9c] sm:$0xff]
    %v184 = vld [vmem:[#allocation8 + $0xa4] sm:$0xf]
    %v185 = vld [vmem:[#allocation8 + $0xa8] sm:$0xff]
    %v186 = vld [vmem:[#allocation8 + $0xb0] sm:$0xf]
    %v187 = vld [vmem:[#allocation8 + $0xb4] sm:$0xff]
    %v188 = vld [vmem:[#allocation8 + $0xbc] sm:$0xf]
    %v189 = vld [vmem:[%s4] sm:$0x7]
    %v191 = vperm.slane %v189, 0
    %v192 = vperm.slane %v189, 1
    %v193 = vperm.slane %v189, 2
    %v229 = vunpack.c.l.b16 %v157
    %v230 = vunpack.c.h.b16 %v157
    %v231 = vunpack.c.l.b16 %v158
    %v232 = vunpack.c.l.b16 %v159
    %v233 = vunpack.c.h.b16 %v159
    %v234 = vunpack.c.l.b16 %v160
    %v235 = vunpack.c.l.b16 %v161
    %v236 = vunpack.c.h.b16 %v161
    %v237 = vunpack.c.l.b16 %v162
    %v238 = vunpack.c.l.b16 %v163
    %v239 = vunpack.c.h.b16 %v163
    %v240 = vunpack.c.l.b16 %v164
    %v241 = vunpack.c.l.b16 %v165
    %v242 = vunpack.c.h.b16 %v165
    %v243 = vunpack.c.l.b16 %v166
    %v244 = vunpack.c.l.b16 %v167
    %v245 = vunpack.c.h.b16 %v167
    %v246 = vunpack.c.l.b16 %v168
    %v247 = vunpack.c.l.b16 %v169
    %v248 = vunpack.c.h.b16 %v169
    %v249 = vunpack.c.l.b16 %v170
    %v250 = vunpack.c.l.b16 %v171
    %v251 = vunpack.c.h.b16 %v171
    %v252 = vunpack.c.l.b16 %v172
    %v253 = vunpack.c.l.b16 %v173
    %v254 = vunpack.c.h.b16 %v173
    %v255 = vunpack.c.l.b16 %v174
    %v256 = vunpack.c.l.b16 %v175
    %v257 = vunpack.c.h.b16 %v175
    %v258 = vunpack.c.l.b16 %v176
    %v259 = vunpack.c.l.b16 %v177
    %v260 = vunpack.c.h.b16 %v177
    %v261 = vunpack.c.l.b16 %v178
    %v262 = vunpack.c.l.b16 %v179
    %v263 = vunpack.c.h.b16 %v179
    %v264 = vunpack.c.l.b16 %v180
    %v265 = vunpack.c.l.b16 %v181
    %v266 = vunpack.c.h.b16 %v181
    %v267 = vunpack.c.l.b16 %v182
    %v268 = vunpack.c.l.b16 %v183
    %v269 = vunpack.c.h.b16 %v183
    %v270 = vunpack.c.l.b16 %v184
    %v271 = vunpack.c.l.b16 %v185
    %v272 = vunpack.c.h.b16 %v185
    %v273 = vunpack.c.l.b16 %v186
    %v274 = vunpack.c.l.b16 %v187
    %v275 = vunpack.c.h.b16 %v187
    %v276 = vunpack.c.l.b16 %v188
    %v277 = vpack.c.b16 %v232, %v229
    %v278 = vpack.c.b16 %v233, %v230
    %v279 = vpack.c.b16 %v234, %v231
    %v280 = vpack.c.b16 %v238, %v235
    %v281 = vpack.c.b16 %v239, %v236
    %v282 = vpack.c.b16 %v240, %v237
    %v283 = vpack.c.b16 %v244, %v241
    %v284 = vpack.c.b16 %v245, %v242
    %v285 = vpack.c.b16 %v246, %v243
    %v286 = vpack.c.b16 %v250, %v247
    %v287 = vpack.c.b16 %v251, %v248
    %v288 = vpack.c.b16 %v252, %v249
    %v289 = vpack.c.b16 %v256, %v253
    %v290 = vpack.c.b16 %v257, %v254
    %v291 = vpack.c.b16 %v258, %v255
    %v292 = vpack.c.b16 %v262, %v259
    %v293 = vpack.c.b16 %v263, %v260
    %v294 = vpack.c.b16 %v264, %v261
    %v295 = vpack.c.b16 %v268, %v265
    %v296 = vpack.c.b16 %v269, %v266
    %v297 = vpack.c.b16 %v270, %v267
    %v298 = vpack.c.b16 %v274, %v271
    %v299 = vpack.c.b16 %v275, %v272
    %v300 = vpack.c.b16 %v276, %v273
    %325 = vmatpush.bf16.msra.mxu0 %v298
    %326 = vmatpush.bf16.msra.mxu0 %v295
    %327 = vmatpush.bf16.msra.mxu0 %v292
    %328 = vmatpush.bf16.msra.mxu0 %v289
    %329 = vmatpush.bf16.msra.mxu0 %v286
    %330 = vmatpush.bf16.msra.mxu0 %v283
    %331 = vmatpush.bf16.msra.mxu0 %v280
    %332 = vmatpush.bf16.msra.mxu0 %v277
    %333 = vmatmul.bf16.gmra.mxu0 %v156
    %v334 = vpop.f32.mrf.mxu0
    %v335 = vadd.f32 %v191, %v334
    %v336 = vpop.f32.mrf.mxu0
    %337 = vdwg.mxu0
    %338 = vmatpush.bf16.msra.mxu0 %v299
    %339 = vmatpush.bf16.msra.mxu0 %v296
    %340 = vmatpush.bf16.msra.mxu0 %v293
    %341 = vmatpush.bf16.msra.mxu0 %v290
    %342 = vmatpush.bf16.msra.mxu0 %v287
    %343 = vmatpush.bf16.msra.mxu0 %v284
    %344 = vmatpush.bf16.msra.mxu0 %v281
    %345 = vmatpush.bf16.msra.mxu0 %v278
    %346 = vmatmul.bf16.gmra.mxu0 %v156
    %v347 = vpop.f32.mrf.mxu0
    %v348 = vadd.f32 %v192, %v347
    %v349 = vpop.f32.mrf.mxu0
    %350 = vdwg.mxu0
    %351 = vmatpush.bf16.msra.mxu0 %v300
    %352 = vmatpush.bf16.msra.mxu0 %v297
    %353 = vmatpush.bf16.msra.mxu0 %v294
    %354 = vmatpush.bf16.msra.mxu0 %v291
    %355 = vmatpush.bf16.msra.mxu0 %v288
    %356 = vmatpush.bf16.msra.mxu0 %v285
    %357 = vmatpush.bf16.msra.mxu0 %v282
    %358 = vmatpush.bf16.msra.mxu0 %v279
    %359 = vmatmul.bf16.gmra.mxu0 %v156
    %v360 = vpop.f32.mrf.mxu0
    %v361 = vadd.f32 %v193, %v360
    %v362 = vpop.f32.mrf.mxu0
    %363 = vdwg.mxu0
    %v364 = vmax.f32 %v335, 0.0
    %v365 = vmax.f32 %v348, 0.0
    %v366 = vmax.f32 %v361, 0.0
    %v367 = vpack.c.bf16 %v364, %v364
    %v368 = vpack.c.bf16 %v365, %v365
    %v369 = vpack.c.bf16 %v366, %v366
    %v370 = vld [vmem:[#allocation10] sm:$0xf]
    %v371 = vld [vmem:[#allocation10 + $0x4] sm:$0xf]
    %v372 = vld [vmem:[#allocation10 + $0x8] sm:$0xf]
    %v373 = vld [vmem:[#allocation10 + $0xc] sm:$0xf]
    %v374 = vld [vmem:[#allocation10 + $0x10] sm:$0xf]
    %v375 = vld [vmem:[#allocation10 + $0x14] sm:$0xf]
    %v376 = vld [vmem:[#allocation10 + $0x18] sm:$0xf]
    %v377 = vld [vmem:[#allocation10 + $0x1c] sm:$0xf]
    %v378 = vld [vmem:[#allocation10 + $0x20] sm:$0xf]
    %v379 = vld [vmem:[#allocation10 + $0x24] sm:$0xf]
    %v380 = vld [vmem:[#allocation10 + $0x28] sm:$0xf]
    %v381 = vld [vmem:[#allocation10 + $0x2c] sm:$0xf]
    %v382 = vld [vmem:[#allocation10 + $0x30] sm:$0xf]
    %v383 = vld [vmem:[#allocation10 + $0x34] sm:$0xf]
    %v384 = vld [vmem:[#allocation10 + $0x38] sm:$0xf]
    %v385 = vld [vmem:[#allocation10 + $0x3c] sm:$0xf]
    %v386 = vld [vmem:[#allocation10 + $0x40] sm:$0xf]
    %v387 = vld [vmem:[#allocation10 + $0x44] sm:$0xf]
    %v388 = vld [vmem:[#allocation10 + $0x48] sm:$0xf]
    %v389 = vld [vmem:[#allocation10 + $0x4c] sm:$0xf]
    %v390 = vld [vmem:[#allocation10 + $0x50] sm:$0xf]
    %v391 = vld [vmem:[#allocation10 + $0x54] sm:$0xf]
    %v392 = vld [vmem:[#allocation10 + $0x58] sm:$0xf]
    %v393 = vld [vmem:[#allocation10 + $0x5c] sm:$0xf]
    %v394 = vld [vmem:[#allocation10 + $0x60] sm:$0xf]
    %v395 = vld [vmem:[#allocation10 + $0x64] sm:$0xf]
    %v396 = vld [vmem:[#allocation10 + $0x68] sm:$0xf]
    %v397 = vld [vmem:[#allocation10 + $0x6c] sm:$0xf]
    %v398 = vld [vmem:[#allocation10 + $0x70] sm:$0xf]
    %v399 = vld [vmem:[#allocation10 + $0x74] sm:$0xf]
    %v400 = vld [vmem:[#allocation10 + $0x78] sm:$0xf]
    %v401 = vld [vmem:[#allocation10 + $0x7c] sm:$0xf]
    %v402 = vld [vmem:[#allocation10 + $0x80] sm:$0xf]
    %v403 = vld [vmem:[#allocation10 + $0x84] sm:$0xf]
    %v404 = vld [vmem:[#allocation10 + $0x88] sm:$0xf]
    %v405 = vld [vmem:[#allocation10 + $0x8c] sm:$0xf]
    %v406 = vld [vmem:[#allocation10 + $0x90] sm:$0xf]
    %v407 = vld [vmem:[#allocation10 + $0x94] sm:$0xf]
    %v408 = vld [vmem:[#allocation10 + $0x98] sm:$0xf]
    %v409 = vld [vmem:[#allocation10 + $0x9c] sm:$0xf]
    %v410 = vld [vmem:[#allocation10 + $0xa0] sm:$0xf]
    %v411 = vld [vmem:[#allocation10 + $0xa4] sm:$0xf]
    %v412 = vld [vmem:[#allocation10 + $0xa8] sm:$0xf]
    %v413 = vld [vmem:[#allocation10 + $0xac] sm:$0xf]
    %v414 = vld [vmem:[#allocation10 + $0xb0] sm:$0xf]
    %v415 = vld [vmem:[#allocation10 + $0xb4] sm:$0xf]
    %v416 = vld [vmem:[#allocation10 + $0xb8] sm:$0xf]
    %v417 = vld [vmem:[#allocation10 + $0xbc] sm:$0xf]
    %v418 = vld [vmem:[%s6] sm:$0x1]
    %v420 = vperm.slane %v418, 0
    %v470 = vunpack.c.l.b16 %v370
    %v471 = vunpack.c.l.b16 %v371
    %v472 = vunpack.c.l.b16 %v372
    %v473 = vunpack.c.l.b16 %v373
    %v474 = vunpack.c.l.b16 %v374
    %v475 = vunpack.c.l.b16 %v375
    %v476 = vunpack.c.l.b16 %v376
    %v477 = vunpack.c.l.b16 %v377
    %v478 = vunpack.c.l.b16 %v378
    %v479 = vunpack.c.l.b16 %v379
    %v480 = vunpack.c.l.b16 %v380
    %v481 = vunpack.c.l.b16 %v381
    %v482 = vunpack.c.l.b16 %v382
    %v483 = vunpack.c.l.b16 %v383
    %v484 = vunpack.c.l.b16 %v384
    %v485 = vunpack.c.l.b16 %v385
    %v486 = vunpack.c.l.b16 %v386
    %v487 = vunpack.c.l.b16 %v387
    %v488 = vunpack.c.l.b16 %v388
    %v489 = vunpack.c.l.b16 %v389
    %v490 = vunpack.c.l.b16 %v390
    %v491 = vunpack.c.l.b16 %v391
    %v492 = vunpack.c.l.b16 %v392
    %v493 = vunpack.c.l.b16 %v393
    %v494 = vunpack.c.l.b16 %v394
    %v495 = vunpack.c.l.b16 %v395
    %v496 = vunpack.c.l.b16 %v396
    %v497 = vunpack.c.l.b16 %v397
    %v498 = vunpack.c.l.b16 %v398
    %v499 = vunpack.c.l.b16 %v399
    %v500 = vunpack.c.l.b16 %v400
    %v501 = vunpack.c.l.b16 %v401
    %v502 = vunpack.c.l.b16 %v402
    %v503 = vunpack.c.l.b16 %v403
    %v504 = vunpack.c.l.b16 %v404
    %v505 = vunpack.c.l.b16 %v405
    %v506 = vunpack.c.l.b16 %v406
    %v507 = vunpack.c.l.b16 %v407
    %v508 = vunpack.c.l.b16 %v408
    %v509 = vunpack.c.l.b16 %v409
    %v510 = vunpack.c.l.b16 %v410
    %v511 = vunpack.c.l.b16 %v411
    %v512 = vunpack.c.l.b16 %v412
    %v513 = vunpack.c.l.b16 %v413
    %v514 = vunpack.c.l.b16 %v414
    %v515 = vunpack.c.l.b16 %v415
    %v516 = vunpack.c.l.b16 %v416
    %v517 = vunpack.c.l.b16 %v417
    %v518 = vpack.c.b16 %v471, %v470
    %v519 = vpack.c.b16 %v473, %v472
    %v520 = vpack.c.b16 %v475, %v474
    %v521 = vpack.c.b16 %v477, %v476
    %v522 = vpack.c.b16 %v479, %v478
    %v523 = vpack.c.b16 %v481, %v480
    %v524 = vpack.c.b16 %v483, %v482
    %v525 = vpack.c.b16 %v485, %v484
    %v526 = vpack.c.b16 %v487, %v486
    %v527 = vpack.c.b16 %v489, %v488
    %v528 = vpack.c.b16 %v491, %v490
    %v529 = vpack.c.b16 %v493, %v492
    %v530 = vpack.c.b16 %v495, %v494
    %v531 = vpack.c.b16 %v497, %v496
    %v532 = vpack.c.b16 %v499, %v498
    %v533 = vpack.c.b16 %v501, %v500
    %v534 = vpack.c.b16 %v503, %v502
    %v535 = vpack.c.b16 %v505, %v504
    %v536 = vpack.c.b16 %v507, %v506
    %v537 = vpack.c.b16 %v509, %v508
    %v538 = vpack.c.b16 %v511, %v510
    %v539 = vpack.c.b16 %v513, %v512
    %v540 = vpack.c.b16 %v515, %v514
    %v541 = vpack.c.b16 %v517, %v516
    %566 = vmatpush.bf16.msra.mxu0 %v525
    %567 = vmatpush.bf16.msra.mxu0 %v524
    %568 = vmatpush.bf16.msra.mxu0 %v523
    %569 = vmatpush.bf16.msra.mxu0 %v522
    %570 = vmatpush.bf16.msra.mxu0 %v521
    %571 = vmatpush.bf16.msra.mxu0 %v520
    %572 = vmatpush.bf16.msra.mxu0 %v519
    %573 = vmatpush.bf16.msra.mxu0 %v518
    %574 = vmatmul.bf16.gmra.mxu0 %v367
    %v575 = vpop.f32.mrf.mxu0
    %v576 = vadd.f32 %v420, %v575
    %v577 = vpop.f32.mrf.mxu0
    %578 = vdwg.mxu0
    %579 = vmatpush.bf16.msra.mxu0 %v533
    %580 = vmatpush.bf16.msra.mxu0 %v532
    %581 = vmatpush.bf16.msra.mxu0 %v531
    %582 = vmatpush.bf16.msra.mxu0 %v530
    %583 = vmatpush.bf16.msra.mxu0 %v529
    %584 = vmatpush.bf16.msra.mxu0 %v528
    %585 = vmatpush.bf16.msra.mxu0 %v527
    %586 = vmatpush.bf16.msra.mxu0 %v526
    %587 = vmatmul.bf16.gmra.mxu0 %v368
    %v588 = vpop.f32.mrf.mxu0
    %v589 = vadd.f32 %v576, %v588
    %v590 = vpop.f32.mrf.mxu0
    %591 = vdwg.mxu0
    %592 = vmatpush.bf16.msra.mxu0 %v541
    %593 = vmatpush.bf16.msra.mxu0 %v540
    %594 = vmatpush.bf16.msra.mxu0 %v539
    %595 = vmatpush.bf16.msra.mxu0 %v538
    %596 = vmatpush.bf16.msra.mxu0 %v537
    %597 = vmatpush.bf16.msra.mxu0 %v536
    %598 = vmatpush.bf16.msra.mxu0 %v535
    %599 = vmatpush.bf16.msra.mxu0 %v534
    %600 = vmatmul.bf16.gmra.mxu0 %v369
    %v601 = vpop.f32.mrf.mxu0
    %v602 = vadd.f32 %v589, %v601
    %v603 = vpop.f32.mrf.mxu0
    %604 = vdwg.mxu0
    %v605 = vmax.f32 %v602, 0.0
    %v606 = vpack.c.bf16 %v605, %v605
    %v607 = vld [vmem:[#allocation11] sm:$0xf]
    %v608 = vld [vmem:[#allocation11 + $0x4] sm:$0xf]
    %v609 = vld [vmem:[#allocation11 + $0x8] sm:$0xf]
    %v610 = vld [vmem:[#allocation11 + $0xc] sm:$0xf]
    %v611 = vld [vmem:[#allocation11 + $0x10] sm:$0xf]
    %v612 = vld [vmem:[#allocation11 + $0x14] sm:$0xf]
    %v613 = vld [vmem:[#allocation11 + $0x18] sm:$0xf]
    %v614 = vld [vmem:[#allocation11 + $0x1c] sm:$0xf]
    %v615 = vld [vmem:[#allocation11 + $0x20] sm:$0xf]
    %v616 = vld [vmem:[#allocation11 + $0x24] sm:$0xf]
    %v617 = vld [vmem:[#allocation11 + $0x28] sm:$0xf]
    %v618 = vld [vmem:[#allocation11 + $0x2c] sm:$0xf]
    %v619 = vld [vmem:[#allocation11 + $0x30] sm:$0xf]
    %v620 = vld [vmem:[#allocation11 + $0x34] sm:$0xf]
    %v621 = vld [vmem:[#allocation11 + $0x38] sm:$0xf]
    %v622 = vld [vmem:[#allocation11 + $0x3c] sm:$0xf]
    %v623 = vld [vmem:[%s8] sm:$0x1]
    %v625 = vperm.slane %v623, 0
    %v643 = vunpack.c.l.b16 %v607
    %v644 = vunpack.c.l.b16 %v608
    %v645 = vunpack.c.l.b16 %v609
    %v646 = vunpack.c.l.b16 %v610
    %v647 = vunpack.c.l.b16 %v611
    %v648 = vunpack.c.l.b16 %v612
    %v649 = vunpack.c.l.b16 %v613
    %v650 = vunpack.c.l.b16 %v614
    %v651 = vunpack.c.l.b16 %v615
    %v652 = vunpack.c.l.b16 %v616
    %v653 = vunpack.c.l.b16 %v617
    %v654 = vunpack.c.l.b16 %v618
    %v655 = vunpack.c.l.b16 %v619
    %v656 = vunpack.c.l.b16 %v620
    %v657 = vunpack.c.l.b16 %v621
    %v658 = vunpack.c.l.b16 %v622
    %v659 = vpack.c.b16 %v644, %v643
    %v660 = vpack.c.b16 %v646, %v645
    %v661 = vpack.c.b16 %v648, %v647
    %v662 = vpack.c.b16 %v650, %v649
    %v663 = vpack.c.b16 %v652, %v651
    %v664 = vpack.c.b16 %v654, %v653
    %v665 = vpack.c.b16 %v656, %v655
    %v666 = vpack.c.b16 %v658, %v657
    %675 = vmatpush.bf16.msra.mxu0 %v666
    %676 = vmatpush.bf16.msra.mxu0 %v665
    %677 = vmatpush.bf16.msra.mxu0 %v664
    %678 = vmatpush.bf16.msra.mxu0 %v663
    %679 = vmatpush.bf16.msra.mxu0 %v662
    %680 = vmatpush.bf16.msra.mxu0 %v661
    %681 = vmatpush.bf16.msra.mxu0 %v660
    %682 = vmatpush.bf16.msra.mxu0 %v659
    %683 = vmatmul.bf16.gmra.mxu0 %v606
    %v684 = vpop.f32.mrf.mxu0
    %v685 = vadd.f32 %v625, %v684
    %v686 = vpop.f32.mrf.mxu0
    %687 = vdwg.mxu0
    %vm688 = vcmask 123904
    %689 = vst.msk [vmem:[#allocation13] sm:$0x3] %vm688, %v685
    // Predicated region
    $region62: #{tpu_custom_call.1} parent=1 // pred_check
      _
    $region63: #{tpu_custom_call.1} parent=1 // pred_check_branch
      %691 = sbr.rel (0) target = $region65
    $region64: #{tpu_custom_call.1} parent=1 // pred_region
      %693 = vsyncadd [#allocation4], 0
      %s695 = sshll.u32 [#allocation13], 4
      %s696 = int_to_ptr.vmem [resolvable:$true] %s695
      %s697 = sshll.u32 %s9, 4
      %s698 = int_to_ptr.hbm [resolvable:$true] %s697
      %700 = dma.vmem_to_hbm [thread:$0]  %s696, 32, %s698, [#allocation4]
    $region65: #{tpu_custom_call.1} parent=1 // pred_fallthru
      _
    // Predicated region
    $region66: #{tpu_custom_call.1} parent=1 // pred_check
      _
    $region67: #{tpu_custom_call.1} parent=1 // pred_check_branch
      %702 = sbr.rel (0) target = $region69
    $region68: #{tpu_custom_call.1} parent=1 // pred_region
      %704 = dma.done [#allocation4], 32
    $region69: #{tpu_custom_call.1} parent=1 // pred_fallthru
      _
    %705 = vsyncpa [#allocation3], 1
    %706 = vsyncpa [#allocation6], 1
    %707 = vsyncpa [#allocation9], 1
    %708 = vsyncpa [#allocation12], 1
    %709 = vsyncpa [#allocation4], 1

</llo_original>
